<compile_context>
chip_gen: v7x
topology: tpu7x:2x2x1
jax: 0.10.0
libtpu: 0.0.40
codegen_flags: <defaults>
</compile_context>

<pallas_src>
import jax
import jax.numpy as jnp
from jax.experimental import pallas as pl
from jax.experimental.pallas import tpu as pltpu  # noqa: F401 (TPU backend)


def _round_up(n, m):
    return ((n + m - 1) // m) * m


def _mm_add_kernel(x2_ref, x1_ref, inp_ref, o_ref):
    # x2_ref : (Mp, Kp)  zero-padded matrix
    # x1_ref : (1,  Kp)  zero-padded row vector (the mm's column operand, as a row)
    # inp_ref: (1,  Mp)  zero-padded row vector
    # o_ref  : (Mp, Mp)  lane-dense output slab
    #
    # Matvec on VPU (elementwise mul) + XLU (row reduce).  The padded K region
    # is zero in BOTH x2 and x1, so the extra contraction terms are exactly 0.
    v1 = jnp.sum(x2_ref[...] * x1_ref[...], axis=-1, keepdims=True)   # (Mp, 1)
    # Broadcast-add (Mp,1) + (1,Mp) -> (Mp,Mp) on the VPU, stored unmasked.
    o_ref[...] = v1 + inp_ref[...]


@jax.jit
def mm_add(x1, x2, inp):
    """v2 = mm(x2, x1) + inp with x2:(M,K), x1:(1,K), inp:(1,M) -> (M,M).

    NOTE: x1 is taken in the module's declared (1, K) row layout; torch.mm is
    interpreted as the matvec x2 @ x1.T (the only shape-consistent reading).
    """
    M, K = x2.shape
    assert x1.shape == (1, K)
    assert inp.shape == (1, M)

    Mp = _round_up(M, 128)   # lane-dense output: last dim a multiple of 128
    Kp = _round_up(K, 128)

    # Zero-pad inputs to (8,128)-aligned shapes.  Padded output rows/cols are
    # garbage-by-construction and sliced off below.
    x2_p = jnp.pad(x2.astype(jnp.float32), ((0, Mp - M), (0, Kp - K)))
    x1_p = jnp.pad(x1.astype(jnp.float32), ((0, 0), (0, Kp - K)))
    inp_p = jnp.pad(inp.astype(jnp.float32), ((0, 0), (0, Mp - M)))

    out_p = pl.pallas_call(
        _mm_add_kernel,
        out_shape=jax.ShapeDtypeStruct((Mp, Mp), jnp.float32),
        in_specs=[
            pl.BlockSpec((Mp, Kp), lambda: (0, 0)),   # x2  : (128, 256)
            pl.BlockSpec((1, Kp), lambda: (0, 0)),    # x1  : (1, 256)
            pl.BlockSpec((1, Mp), lambda: (0, 0)),    # inp : (1, 128)
        ],
        out_specs=pl.BlockSpec((Mp, Mp), lambda: (0, 0)),
    )(x2_p, x1_p, inp_p)

    return out_p[:M, :M]


if __name__ == "__main__":
    # Exact (small) shapes from the original module.
    M, K = 113, 197

    key = jax.random.PRNGKey(0)
    k1, k2, k3 = jax.random.split(key, 3)
    x1 = jax.random.normal(k1, (1, K), dtype=jnp.float32)    # module's x1
    x2 = jax.random.normal(k2, (M, K), dtype=jnp.float32)    # module's x2
    inp = jax.random.normal(k3, (1, M), dtype=jnp.float32)   # module's inp

    out = mm_add(x1, x2, inp)
    out = jax.block_until_ready(out)

    # Reference: the intended torch semantics (matvec + (M,1)+(1,M) broadcast).
    ref = jnp.dot(x2, x1.T) + inp
    assert out.shape == (M, M)
    assert jnp.allclose(out, ref, atol=1e-3, rtol=1e-4), float(
        jnp.max(jnp.abs(out - ref)))

    print("KERNEL_OK")
</pallas_src>

<mosaic_0001>
module attributes {stable_mosaic.version = 11 : i64} {
  func.func @_mm_add_kernel(%arg0: memref<128x256xf32, #tpu.memory_space<vmem>>, %arg1: memref<1x256xf32, #tpu.memory_space<vmem>>, %arg2: memref<1x128xf32, #tpu.memory_space<vmem>>, %arg3: memref<128x128xf32, #tpu.memory_space<vmem>>) attributes {dimension_semantics = [], scalar_prefetch = 0 : i64, scratch_operands = 0 : i64, tpu.core_type = #tpu.core_type<tc>} {
    %c0 = arith.constant 0 : index
    %c0_0 = arith.constant 0 : index
    %0 = vector.load %arg0[%c0, %c0_0] : memref<128x256xf32, #tpu.memory_space<vmem>>, vector<128x256xf32>
    %c0_1 = arith.constant 0 : index
    %c0_2 = arith.constant 0 : index
    %1 = vector.load %arg1[%c0_1, %c0_2] : memref<1x256xf32, #tpu.memory_space<vmem>>, vector<1x256xf32>
    %2 = vector.broadcast %1 : vector<1x256xf32> to vector<128x256xf32>
    %3 = arith.mulf %0, %2 : vector<128x256xf32>
    %cst = arith.constant dense<0.000000e+00> : vector<128xf32>
    %4 = vector.multi_reduction <add>, %3, %cst [1] : vector<128x256xf32> to vector<128xf32>
    %5 = vector.shape_cast %4 : vector<128xf32> to vector<128x1xf32>
    %c0_3 = arith.constant 0 : index
    %c0_4 = arith.constant 0 : index
    %6 = vector.load %arg2[%c0_3, %c0_4] : memref<1x128xf32, #tpu.memory_space<vmem>>, vector<1x128xf32>
    %7 = vector.broadcast %5 : vector<128x1xf32> to vector<128x128xf32>
    %8 = vector.broadcast %6 : vector<1x128xf32> to vector<128x128xf32>
    %9 = arith.addf %7, %8 : vector<128x128xf32>
    %c0_5 = arith.constant 0 : index
    %c0_6 = arith.constant 0 : index
    %10 = vector.load %arg3[%c0_5, %c0_6] : memref<128x128xf32, #tpu.memory_space<vmem>>, vector<128x128xf32>
    tpu.vector_store %arg3[%c0_5, %c0_6], %9 {strides = array<i32>} : memref<128x128xf32, #tpu.memory_space<vmem>>, vector<128x128xf32>,
    return
  }
}

</mosaic_0001>

<llo_original>
// kernel: mm_add.1
$region0: #{mm_add.1}
  #allocation0 [shape = 'u32[]', space=smem, size = 0x4, offset = 0x4, fixed_abs, tag = 'smem constant byte address 0x4 - core index']
  #allocation1 [shape = 'u32[144,128]{1,0:T(1,128)}', space=vmem, size = 0x12000, scoped, tag = 'internal scratch']
  %s0 = inlined_call_operand.vmem [shape: f32[128,256], index: 0, kind: input, shape index: {}]
  %s1 = inlined_call_operand.vmem [shape: f32[1,256], index: 1, kind: input, shape index: {}]
  %s2 = inlined_call_operand.vmem [shape: f32[1,128], index: 2, kind: input, shape index: {}]
  %s3 = inlined_call_operand.vmem [shape: f32[128,128], index: 3, kind: output, shape index: {}]
  %s4 = sld [smem:[#allocation0]]
  $region22: #{mm_add.1} parent=0
    _
  %s6 = ssub.s32 1, %s4
  %s7 = scalar_select 0, %s6, %s4
  // Predicated region
  $region2: #{mm_add.1} parent=0 // pred_check
    _
  $region3: #{mm_add.1} parent=0 // pred_check_branch
    %9 = sbr.rel (0) target = $region5
  $region4: #{mm_add.1} parent=0 // pred_region
    _
  $region5: #{mm_add.1} parent=0 // pred_fallthru
    _
  // Predicated region
  $region6: #{mm_add.1} parent=0 // pred_check
    _
  $region7: #{mm_add.1} parent=0 // pred_check_branch
    %11 = sbr.rel (0) target = $region9
  $region8: #{mm_add.1} parent=0 // pred_region
    _
  $region9: #{mm_add.1} parent=0 // pred_fallthru
    _
  // Predicated region
  $region10: #{mm_add.1} parent=0 // pred_check
    _
  $region11: #{mm_add.1} parent=0 // pred_check_branch
    %13 = sbr.rel (0) target = $region13
  $region12: #{mm_add.1} parent=0 // pred_region
    _
  $region13: #{mm_add.1} parent=0 // pred_fallthru
    _
  %v14 = vld [vmem:[%s0] sm:$0xff]
  %v15 = vld [vmem:[%s0 + $0x8] sm:$0xff]
  %v16 = vld [vmem:[%s0 + $0x10] sm:$0xff]
  %v17 = vld [vmem:[%s0 + $0x18] sm:$0xff]
  %v18 = vld [vmem:[%s0 + $0x20] sm:$0xff]
  %v19 = vld [vmem:[%s0 + $0x28] sm:$0xff]
  %v20 = vld [vmem:[%s0 + $0x30] sm:$0xff]
  %v21 = vld [vmem:[%s0 + $0x38] sm:$0xff]
  %v22 = vld [vmem:[%s0 + $0x40] sm:$0xff]
  %v23 = vld [vmem:[%s0 + $0x48] sm:$0xff]
  %v24 = vld [vmem:[%s0 + $0x50] sm:$0xff]
  %v25 = vld [vmem:[%s0 + $0x58] sm:$0xff]
  %v26 = vld [vmem:[%s0 + $0x60] sm:$0xff]
  %v27 = vld [vmem:[%s0 + $0x68] sm:$0xff]
  %v28 = vld [vmem:[%s0 + $0x70] sm:$0xff]
  %v29 = vld [vmem:[%s0 + $0x78] sm:$0xff]
  %v30 = vld [vmem:[%s0 + $0x80] sm:$0xff]
  %v31 = vld [vmem:[%s0 + $0x88] sm:$0xff]
  %v32 = vld [vmem:[%s0 + $0x90] sm:$0xff]
  %v33 = vld [vmem:[%s0 + $0x98] sm:$0xff]
  %v34 = vld [vmem:[%s0 + $0xa0] sm:$0xff]
  %v35 = vld [vmem:[%s0 + $0xa8] sm:$0xff]
  %v36 = vld [vmem:[%s0 + $0xb0] sm:$0xff]
  %v37 = vld [vmem:[%s0 + $0xb8] sm:$0xff]
  %v38 = vld [vmem:[%s0 + $0xc0] sm:$0xff]
  %v39 = vld [vmem:[%s0 + $0xc8] sm:$0xff]
  %v40 = vld [vmem:[%s0 + $0xd0] sm:$0xff]
  %v41 = vld [vmem:[%s0 + $0xd8] sm:$0xff]
  %v42 = vld [vmem:[%s0 + $0xe0] sm:$0xff]
  %v43 = vld [vmem:[%s0 + $0xe8] sm:$0xff]
  %v44 = vld [vmem:[%s0 + $0xf0] sm:$0xff]
  %v45 = vld [vmem:[%s0 + $0xf8] sm:$0xff]
  %v46 = vld [vmem:[%s1] sm:$0x3]
  %v48 = vlaneseq
  %v49 = vshrl.u32 %v48, 7
  %v50 = vsub.s32 0, %v49
  %v51 = vrot.slane %v46, %v50
  %v52 = vlaneseq
  %v53 = vshrl.u32 %v52, 7
  %v54 = vsub.s32 1, %v53
  %v55 = vrot.slane %v46, %v54
  %v58 = vmul.f32 %v14, %v51
  %v59 = vmul.f32 %v15, %v55
  %v60 = vmul.f32 %v16, %v51
  %v61 = vmul.f32 %v17, %v55
  %v62 = vmul.f32 %v18, %v51
  %v63 = vmul.f32 %v19, %v55
  %v64 = vmul.f32 %v20, %v51
  %v65 = vmul.f32 %v21, %v55
  %v66 = vmul.f32 %v22, %v51
  %v67 = vmul.f32 %v23, %v55
  %v68 = vmul.f32 %v24, %v51
  %v69 = vmul.f32 %v25, %v55
  %v70 = vmul.f32 %v26, %v51
  %v71 = vmul.f32 %v27, %v55
  %v72 = vmul.f32 %v28, %v51
  %v73 = vmul.f32 %v29, %v55
  %v74 = vmul.f32 %v30, %v51
  %v75 = vmul.f32 %v31, %v55
  %v76 = vmul.f32 %v32, %v51
  %v77 = vmul.f32 %v33, %v55
  %v78 = vmul.f32 %v34, %v51
  %v79 = vmul.f32 %v35, %v55
  %v80 = vmul.f32 %v36, %v51
  %v81 = vmul.f32 %v37, %v55
  %v82 = vmul.f32 %v38, %v51
  %v83 = vmul.f32 %v39, %v55
  %v84 = vmul.f32 %v40, %v51
  %v85 = vmul.f32 %v41, %v55
  %v86 = vmul.f32 %v42, %v51
  %v87 = vmul.f32 %v43, %v55
  %v88 = vmul.f32 %v44, %v51
  %v89 = vmul.f32 %v45, %v55
  %v90 = vadd.f32 %v58, %v59
  %91 = vadd.xlane.f32.xlu0 %v90
  %v92 = vpop.xlane.xlu0 %91
  %v93 = vadd.f32 %v60, %v61
  %94 = vadd.xlane.f32.xlu0 %v93
  %v95 = vpop.xlane.xlu0 %94
  %v96 = vadd.f32 %v62, %v63
  %97 = vadd.xlane.f32.xlu0 %v96
  %v98 = vpop.xlane.xlu0 %97
  %v99 = vadd.f32 %v64, %v65
  %100 = vadd.xlane.f32.xlu0 %v99
  %v101 = vpop.xlane.xlu0 %100
  %v102 = vadd.f32 %v66, %v67
  %103 = vadd.xlane.f32.xlu0 %v102
  %v104 = vpop.xlane.xlu0 %103
  %v105 = vadd.f32 %v68, %v69
  %106 = vadd.xlane.f32.xlu0 %v105
  %v107 = vpop.xlane.xlu0 %106
  %v108 = vadd.f32 %v70, %v71
  %109 = vadd.xlane.f32.xlu0 %v108
  %v110 = vpop.xlane.xlu0 %109
  %v111 = vadd.f32 %v72, %v73
  %112 = vadd.xlane.f32.xlu0 %v111
  %v113 = vpop.xlane.xlu0 %112
  %v114 = vadd.f32 %v74, %v75
  %115 = vadd.xlane.f32.xlu0 %v114
  %v116 = vpop.xlane.xlu0 %115
  %v117 = vadd.f32 %v76, %v77
  %118 = vadd.xlane.f32.xlu0 %v117
  %v119 = vpop.xlane.xlu0 %118
  %v120 = vadd.f32 %v78, %v79
  %121 = vadd.xlane.f32.xlu0 %v120
  %v122 = vpop.xlane.xlu0 %121
  %v123 = vadd.f32 %v80, %v81
  %124 = vadd.xlane.f32.xlu0 %v123
  %v125 = vpop.xlane.xlu0 %124
  %v126 = vadd.f32 %v82, %v83
  %127 = vadd.xlane.f32.xlu0 %v126
  %v128 = vpop.xlane.xlu0 %127
  %v129 = vadd.f32 %v84, %v85
  %130 = vadd.xlane.f32.xlu0 %v129
  %v131 = vpop.xlane.xlu0 %130
  %v132 = vadd.f32 %v86, %v87
  %133 = vadd.xlane.f32.xlu0 %v132
  %v134 = vpop.xlane.xlu0 %133
  %v135 = vadd.f32 %v88, %v89
  %136 = vadd.xlane.f32.xlu0 %v135
  %v137 = vpop.xlane.xlu0 %136
  %v138 = vld [vmem:[%s2] sm:$0x1]
  %v140 = vlaneseq
  %v141 = vshrl.u32 %v140, 7
  %v142 = vsub.s32 0, %v141
  %v143 = vrot.slane %v138, %v142
  %v145 = vadd.f32 %v92, %v143
  %v146 = vadd.f32 %v95, %v143
  %v147 = vadd.f32 %v98, %v143
  %v148 = vadd.f32 %v101, %v143
  %v149 = vadd.f32 %v104, %v143
  %v150 = vadd.f32 %v107, %v143
  %v151 = vadd.f32 %v110, %v143
  %v152 = vadd.f32 %v113, %v143
  %v153 = vadd.f32 %v116, %v143
  %v154 = vadd.f32 %v119, %v143
  %v155 = vadd.f32 %v122, %v143
  %v156 = vadd.f32 %v125, %v143
  %v157 = vadd.f32 %v128, %v143
  %v158 = vadd.f32 %v131, %v143
  %v159 = vadd.f32 %v134, %v143
  %v160 = vadd.f32 %v137, %v143
  %161 = vst [vmem:[%s3] sm:$0xff] %v145
  %162 = vst [vmem:[%s3 + $0x8] sm:$0xff] %v146
  %163 = vst [vmem:[%s3 + $0x10] sm:$0xff] %v147
  %164 = vst [vmem:[%s3 + $0x18] sm:$0xff] %v148
  %165 = vst [vmem:[%s3 + $0x20] sm:$0xff] %v149
  %166 = vst [vmem:[%s3 + $0x28] sm:$0xff] %v150
  %167 = vst [vmem:[%s3 + $0x30] sm:$0xff] %v151
  %168 = vst [vmem:[%s3 + $0x38] sm:$0xff] %v152
  %169 = vst [vmem:[%s3 + $0x40] sm:$0xff] %v153
  %170 = vst [vmem:[%s3 + $0x48] sm:$0xff] %v154
  %171 = vst [vmem:[%s3 + $0x50] sm:$0xff] %v155
  %172 = vst [vmem:[%s3 + $0x58] sm:$0xff] %v156
  %173 = vst [vmem:[%s3 + $0x60] sm:$0xff] %v157
  %174 = vst [vmem:[%s3 + $0x68] sm:$0xff] %v158
  %175 = vst [vmem:[%s3 + $0x70] sm:$0xff] %v159
  %176 = vst [vmem:[%s3 + $0x78] sm:$0xff] %v160
  // Predicated region
  $region14: #{mm_add.1} parent=0 // pred_check
    _
  $region15: #{mm_add.1} parent=0 // pred_check_branch
    %178 = sbr.rel (0) target = $region17
  $region16: #{mm_add.1} parent=0 // pred_region
    _
  $region17: #{mm_add.1} parent=0 // pred_fallthru
    _
  // Predicated region
  $region18: #{mm_add.1} parent=0 // pred_check
    _
  $region19: #{mm_add.1} parent=0 // pred_check_branch
    %180 = sbr.rel (0) target = $region21
  $region20: #{mm_add.1} parent=0 // pred_region
    _
  $region21: #{mm_add.1} parent=0 // pred_fallthru
    _

</llo_original>
